<compile_context>
chip_gen: v7x
topology: tpu7x:2x2x1
jax: 0.10.0
libtpu: 0.0.40
codegen_flags: <defaults>
</compile_context>

<pallas_src>
import numpy as np
import jax
import jax.numpy as jnp
from jax import lax
from jax.experimental import pallas as pl
from jax.experimental.pallas import tpu as pltpu

LANE = 128     # TPU lane width: feature/hidden/class dims padded to this
SUBLANE = 8    # sublane quantum: row blocks padded to this


def _round_up(n, m):
    return ((n + m - 1) // m) * m


def _pad2(a, rows, cols):
    a = jnp.asarray(a, jnp.float32)
    r, c = a.shape
    return jnp.pad(a, ((0, rows - r), (0, cols - c)))


# ----------------------------------------------------------------------------
# Fused Pallas kernel (masked aggregation + conv + ReLU + readout, batched)
# ----------------------------------------------------------------------------

def _make_fused_kernel(e_pads, f_pad, b_blk):
    """e_pads: per-conv-edge-type padded edge counts (static Python ints)."""
    T = len(e_pads)

    def kernel(*refs):
        # prefetch (SMEM): per-type filtered global src row indices
        src_refs = refs[:T]
        # VMEM inputs: per-type (mask, valid) then dense operands
        mask_refs = refs[T:T + 2 * T:2]           # (b_blk, e_pad_t) each
        valid_refs = refs[T + 1:T + 2 * T:2]      # (1, e_pad_t) each
        (x_all_ref, x_tgt_ref, w_cat_ref, b_ref,
         w_out_ref, b_out_ref) = refs[3 * T:3 * T + 6]
        out_ref = refs[3 * T + 6]                 # (b_blk, c_pad)
        gat_refs = refs[3 * T + 7:3 * T + 7 + T]  # (e_pad_t, f_pad) scratch
        feat_ref = refs[3 * T + 7 + T]            # (b_blk, (T+1)*f_pad) scratch

        for t in range(T):
            e_pad = e_pads[t]
            src_ref = src_refs[t]
            gat_ref = gat_refs[t]

            # (a) blocked gather: 8 source rows per iteration, one full
            #     (8,128)-aligned store into the (E_pad_t, F_pad) scratch.
            def gather_blk(blk, carry, _src=src_ref, _gat=gat_ref):
                base = pl.multiple_of(blk * SUBLANE, SUBLANE)
                rows = [x_all_ref[pl.ds(_src[base + j], 1), :]
                        for j in range(SUBLANE)]
                _gat[pl.ds(base, SUBLANE), :] = jnp.concatenate(rows, axis=0)
                return carry

            lax.fori_loop(0, e_pad // SUBLANE, gather_blk, 0, unroll=True)

            # (b) lane-dense per-edge weights (padding edges -> weight 0) and
            #     MXU reduce over edges: acc_t = W(B, E) @ gathered(E, F).
            w = jax.nn.sigmoid(mask_refs[t][...]) * valid_refs[t][...]
            acc = jnp.dot(w, gat_ref[...], preferred_element_type=jnp.float32)
            feat_ref[:, t * f_pad:(t + 1) * f_pad] = acc

        # Root term occupies the last F_pad block of the stacked weight.
        feat_ref[:, T * f_pad:(T + 1) * f_pad] = jnp.broadcast_to(
            x_tgt_ref[...], (b_blk, f_pad))

        # Conv (+ summed per-edge-type bias), ReLU, readout: MXU dots, M=b_blk.
        h = jnp.dot(feat_ref[...], w_cat_ref[...],
                    preferred_element_type=jnp.float32) + b_ref[...]
        h = jnp.maximum(h, 0.0)
        out_ref[...] = jnp.dot(h, w_out_ref[...],
                               preferred_element_type=jnp.float32) + b_out_ref[...]

    return kernel


# ----------------------------------------------------------------------------
# Synthetic wrapped hetero GNN (the `model` inside CaptumHeteroModel)
# ----------------------------------------------------------------------------

class HeteroGNN:
    """Single HeteroConv(GraphConv) layer into `target` + ReLU + Linear readout.

    Weight packing, graph-structure filtering and pallas_call construction are
    precomputed / cached, so only mask- and feature-dependent work runs per
    Captum forward.
    """

    def __init__(self, params, node_types, edge_types, num_nodes, target='paper'):
        self.node_types = node_types
        self.edge_types = edge_types
        self.num_nodes = num_nodes
        self.target = target
        self.hidden = params['hidden']

        # Edge types not pointing into the target node type are ignored by the
        # readout in this single-layer model (skip instead of asserting).
        self.conv_edge_types = [et for et in edge_types if et[2] == target]
        assert self.conv_edge_types, "no edge types into the target node type"

        w_out, b_out = params['readout']
        f_in = params['conv'][self.conv_edge_types[0]][0].shape[0]
        self.classes = w_out.shape[1]
        self.f_pad = _round_up(f_in, LANE)
        self.h_pad = _round_up(self.hidden, LANE)
        self.c_pad = _round_up(self.classes, LANE)

        # Hoisted parameter packing: pad to 128 lanes and merge the small
        # matmuls into one stacked weight [W_rel_0; W_rel_1; ...; sum_t W_root].
        # TODO(synk): optional bf16 storage of x_all / w_cat / w_out would halve
        # VMEM + DMA bytes on v6e/v7x; kept f32 here for a tight correctness check.
        w_rel_blocks = []
        w_root_sum = jnp.zeros((f_in, self.hidden), jnp.float32)
        b_sum = jnp.zeros((1, self.hidden), jnp.float32)
        for et in self.conv_edge_types:
            w_rel, w_root, b = params['conv'][et]
            w_rel_blocks.append(_pad2(w_rel, self.f_pad, self.h_pad))
            w_root_sum = w_root_sum + w_root
            b_sum = b_sum + b          # bias applied once per edge type (= reference)
        w_rel_blocks.append(_pad2(w_root_sum, self.f_pad, self.h_pad))
        self.w_cat = jnp.concatenate(w_rel_blocks, axis=0)   # ((T+1)*F_pad, H_pad)
        self.b_sum = _pad2(b_sum, 1, self.h_pad)
        self.w_out = _pad2(w_out, self.h_pad, self.c_pad)
        self.b_out = _pad2(b_out, 1, self.c_pad)

        # Row layout of the stacked node-feature matrix.
        self.node_row_off = {}
        off = 0
        for nt in node_types:
            self.node_row_off[nt] = off
            off += _round_up(num_nodes[nt], SUBLANE)
        self.n_rows = off

        self._struct_cache = {}
        self._call_cache = {}

    # -- graph-structure preprocessing (content-keyed cache) -------------------
    def _prepare_structure(self, edge_index_dict, target_idx):
        key_parts = [int(target_idx)]
        raw = []
        for et in self.conv_edge_types:
            src = np.asarray(edge_index_dict[et][0], dtype=np.int64)
            dst = np.asarray(edge_index_dict[et][1], dtype=np.int64)
            raw.append((et, src, dst))
            key_parts.append(('__'.join(et), src.tobytes(), dst.tobytes()))
        struct_key = hash(tuple(key_parts))
        hit = self._struct_cache.get(struct_key)
        if hit is not None:
            return hit

        per_type = []
        for et, src, dst in raw:
            src_t = et[0]
            # Host-side edge filtering: only edges into the target row survive.
            keep = np.nonzero(dst == int(target_idx))[0].astype(np.int32)
            deg = int(keep.shape[0])
            e_pad = max(_round_up(deg, SUBLANE), SUBLANE)
            src_pad = np.zeros((e_pad,), np.int32)          # padding -> row 0 (finite)
            if deg:
                src_pad[:deg] = src[keep].astype(np.int32) + self.node_row_off[src_t]
            valid = np.zeros((1, e_pad), np.float32)
            valid[0, :deg] = 1.0
            per_type.append((jnp.asarray(src_pad), jnp.asarray(keep),
                             jnp.asarray(valid), e_pad, deg))
        self._struct_cache[struct_key] = per_type
        return per_type

    # -- fused pallas_call construction (cached per shape config) --------------
    def _build_fused_call(self, e_pads, b_pad, b_blk):
        T = len(e_pads)
        f_pad, h_pad, c_pad, n_rows = self.f_pad, self.h_pad, self.c_pad, self.n_rows
        kernel = _make_fused_kernel(e_pads, f_pad, b_blk)

        in_specs = []
        for e_pad in e_pads:
            in_specs.append(pl.BlockSpec((b_blk, e_pad), lambda i, *_: (i, 0)))  # mask
            in_specs.append(pl.BlockSpec((1, e_pad), lambda i, *_: (0, 0)))      # valid
        # TODO(synk): for very large graphs on v7x (64 MiB VMEM) keep x_all at
        # memory_space=pl.ANY and DMA only gathered rows; here it stays VMEM-resident.
        in_specs += [
            pl.BlockSpec((n_rows, f_pad), lambda i, *_: (0, 0)),                 # x_all
            pl.BlockSpec((1, f_pad), lambda i, *_: (0, 0)),                      # x_tgt
            pl.BlockSpec(((T + 1) * f_pad, h_pad), lambda i, *_: (0, 0)),        # w_cat
            pl.BlockSpec((1, h_pad), lambda i, *_: (0, 0)),                      # b_sum
            pl.BlockSpec((h_pad, c_pad), lambda i, *_: (0, 0)),                  # w_out
            pl.BlockSpec((1, c_pad), lambda i, *_: (0, 0)),                      # b_out
        ]
        out_specs = pl.BlockSpec((b_blk, c_pad), lambda i, *_: (i, 0))
        scratch = ([pltpu.VMEM((e_pad, f_pad), jnp.float32) for e_pad in e_pads]
                   + [pltpu.VMEM((b_blk, (T + 1) * f_pad), jnp.float32)])

        # VMEM budget sized to the actual buffers (v5e default scoped cap: 16 MiB).
        f32 = 4
        in_bytes = sum((b_pad * e + e) * f32 for e in e_pads)
        in_bytes += (n_rows * f_pad + f_pad + (T + 1) * f_pad * h_pad
                     + h_pad + h_pad * c_pad + c_pad) * f32
        out_bytes = b_pad * c_pad * f32
        scr_bytes = (sum(e_pads) * f_pad + b_blk * (T + 1) * f_pad) * f32
        need = 2 * (in_bytes + out_bytes) + scr_bytes + (4 << 20)
        vmem_limit = int(min(max(need, 32 << 20), 64 << 20))

        return pl.pallas_call(
            kernel,
            out_shape=jax.ShapeDtypeStruct((b_pad, c_pad), jnp.float32),
            grid_spec=pltpu.PrefetchScalarGridSpec(
                num_scalar_prefetch=T,                 # per-type src indices -> SMEM
                grid=(b_pad // b_blk,),                # batch blocks (v7x: 2 TCs)
                in_specs=in_specs,
                out_specs=out_specs,
                scratch_shapes=scratch),
            compiler_params=pltpu.CompilerParams(
                dimension_semantics=("parallel",),
                vmem_limit_bytes=vmem_limit),
        )

    def _get_fused_call(self, e_pads, b_pad, b_blk):
        key = (e_pads, b_pad, b_blk)
        call = self._call_cache.get(key)
        if call is None:
            call = self._build_fused_call(e_pads, b_pad, b_blk)
            self._call_cache[key] = call
        return call

    # -- per-forward path -------------------------------------------------------
    def forward_target(self, x_dict, edge_index_dict, edge_mask_dict, target_idx):
        # TODO(synk): mask_type='node' (edge_mask_dict=None) model path not wired;
        # 'edge' / 'node_and_edge' always supply edge masks.
        assert edge_mask_dict is not None
        per_type = self._prepare_structure(edge_index_dict, target_idx)

        any_mask = jnp.asarray(edge_mask_dict[self.conv_edge_types[0]])
        B = int(any_mask.shape[0]) if any_mask.ndim == 2 else 1
        b_pad8 = max(_round_up(B, SUBLANE), SUBLANE)
        if b_pad8 <= LANE:
            b_blk = b_pad = b_pad8
        else:
            b_blk, b_pad = LANE, _round_up(B, LANE)

        e_pads = tuple(p[3] for p in per_type)
        call = self._get_fused_call(e_pads, b_pad, b_blk)

        # Per-forward glue is O(N*F + B*deg); masks are gathered with the same
        # surviving-edge indices as the src rows so weights stay aligned.
        src_args, mv_args = [], []
        for (src_pad, keep_idx, valid, e_pad, deg), et in zip(
                per_type, self.conv_edge_types):
            src_args.append(src_pad)
            m = jnp.asarray(edge_mask_dict[et], jnp.float32)
            if m.ndim == 1:
                m = m[None, :]
            m = jnp.take(m, keep_idx, axis=1)                       # (B, deg)
            m = jnp.pad(m, ((0, b_pad - B), (0, e_pad - deg)))      # lane-dense
            mv_args += [m, valid]

        blocks = [_pad2(x_dict[nt],
                        _round_up(self.num_nodes[nt], SUBLANE), self.f_pad)
                  for nt in self.node_types]
        x_all = jnp.concatenate(blocks, axis=0)                     # [N_rows, F_pad]
        x_tgt = _pad2(jnp.asarray(x_dict[self.target], jnp.float32)
                      [target_idx:target_idx + 1, :], 1, self.f_pad)

        out_pad = call(*src_args, *mv_args, x_all, x_tgt,
                       self.w_cat, self.b_sum, self.w_out, self.b_out)
        return out_pad[:B, :self.classes]                           # (B, CLASSES)


# ----------------------------------------------------------------------------
# CaptumHeteroModel wrapper (argument plumbing of the torch module)
# ----------------------------------------------------------------------------

class CaptumHeteroModelPallas:
    def __init__(self, model, mask_type, output_idx, metadata):
        assert mask_type in ['edge', 'node', 'node_and_edge']
        self.model = model
        self.mask_type = mask_type
        self.output_idx = output_idx
        self.node_types = metadata[0]
        self.edge_types = metadata[1]
        self.num_node_types = len(self.node_types)
        self.num_edge_types = len(self.edge_types)

    def _captum_data_to_hetero_data(self, *args):
        if self.mask_type == 'node':
            node_tensors = [m[0] for m in args[:self.num_node_types]]  # squeeze(0)
            x_dict = dict(zip(self.node_types, node_tensors))
            edge_index_dict = args[self.num_node_types]
            edge_mask_dict = None
        elif self.mask_type == 'edge':
            edge_mask_tensors = args[:self.num_edge_types]             # keep (B, E)
            x_dict = args[self.num_edge_types]
            edge_index_dict = args[self.num_edge_types + 1]
            edge_mask_dict = dict(zip(self.edge_types, edge_mask_tensors))
        else:  # node_and_edge
            node_tensors = [m[0] for m in args[:self.num_node_types]]
            x_dict = dict(zip(self.node_types, node_tensors))
            edge_mask_tensors = args[self.num_node_types:
                                     self.num_node_types + self.num_edge_types]
            edge_index_dict = args[self.num_node_types + self.num_edge_types]
            edge_mask_dict = dict(zip(self.edge_types, edge_mask_tensors))
        return x_dict, edge_index_dict, edge_mask_dict

    def forward(self, *args):
        if self.mask_type == 'node':
            assert len(args) >= self.num_node_types + 1
            len_remaining = len(args) - (self.num_node_types + 1)
        elif self.mask_type == 'edge':
            assert len(args) >= self.num_edge_types + 2
            len_remaining = len(args) - (self.num_edge_types + 2)
        else:
            assert len(args) >= self.num_node_types + self.num_edge_types + 1
            len_remaining = len(args) - (self.num_node_types +
                                         self.num_edge_types + 1)
        assert len_remaining == 0  # no extra model args in this synthetic setup

        x_dict, edge_index_dict, edge_mask_dict = \
            self._captum_data_to_hetero_data(*args)

        # set_hetero_masks(apply_sigmoid=True) / clear_masks are functional here:
        # sigmoid(mask) is consumed inside the fused kernel.
        if self.output_idx is not None:
            # x[output_idx].unsqueeze(0), with the row selection pushed into the
            # kernel so only the target row is ever computed.
            return self.model.forward_target(x_dict, edge_index_dict,
                                             edge_mask_dict, self.output_idx)
        # TODO(synk): output_idx=None (full-node-output) path not fused.
        raise NotImplementedError("output_idx=None path not implemented")


# ----------------------------------------------------------------------------
# Pure-JAX reference (full graph, then row-select — for correctness check)
# ----------------------------------------------------------------------------

def reference_forward(params, edge_types, num_nodes, x_dict, edge_index_dict,
                      edge_mask_dict, output_idx, target='paper'):
    n_tgt = num_nodes[target]
    out = jnp.zeros((n_tgt, params['hidden']), jnp.float32)
    for et in edge_types:
        src_t, _, dst_t = et
        src, dst = edge_index_dict[et]
        m = jax.nn.sigmoid(edge_mask_dict[et])
        msgs = x_dict[src_t][src] * m[:, None]
        agg = jax.ops.segment_sum(msgs, dst, num_segments=n_tgt)
        w_rel, w_root, b = params['conv'][et]
        out = out + agg @ w_rel + x_dict[dst_t] @ w_root + b
    w_out, b_out = params['readout']
    logits = jnp.maximum(out, 0.0) @ w_out + b_out
    return logits[output_idx][None, :]


# ----------------------------------------------------------------------------
# Main
# ----------------------------------------------------------------------------

if __name__ == "__main__":
    key = jax.random.PRNGKey(0)

    node_types = ['paper', 'author']
    edge_types = [('author', 'writes', 'paper'), ('paper', 'cites', 'paper')]
    metadata = (node_types, edge_types)

    num_nodes = {'paper': 12, 'author': 8}
    num_edges = {edge_types[0]: 20, edge_types[1]: 16}
    F_IN, HIDDEN, CLASSES = 16, 32, 4
    OUTPUT_IDX = 0

    keys = jax.random.split(key, 20)
    ki = iter(keys)

    # --- deterministic parameters ---
    params = {'hidden': HIDDEN, 'conv': {}, 'readout': None}
    for et in edge_types:
        w_rel = jax.random.normal(next(ki), (F_IN, HIDDEN), jnp.float32) * 0.1
        w_root = jax.random.normal(next(ki), (F_IN, HIDDEN), jnp.float32) * 0.1
        b = jax.random.normal(next(ki), (1, HIDDEN), jnp.float32) * 0.01
        params['conv'][et] = (w_rel, w_root, b)
    w_out = jax.random.normal(next(ki), (HIDDEN, CLASSES), jnp.float32) * 0.1
    b_out = jax.random.normal(next(ki), (1, CLASSES), jnp.float32) * 0.01
    params['readout'] = (w_out, b_out)

    # --- deterministic inputs (captum formats) ---
    x_paper = jax.random.normal(next(ki), (1, num_nodes['paper'], F_IN), jnp.float32)
    x_author = jax.random.normal(next(ki), (1, num_nodes['author'], F_IN), jnp.float32)
    edge_mask_writes = jax.random.normal(next(ki), (1, num_edges[edge_types[0]]), jnp.float32)
    edge_mask_cites = jax.random.normal(next(ki), (1, num_edges[edge_types[1]]), jnp.float32)

    edge_index_dict = {}
    for et in edge_types:
        src_t, _, dst_t = et
        e = num_edges[et]
        src = jax.random.randint(next(ki), (e,), 0, num_nodes[src_t])
        dst = jax.random.randint(next(ki), (e,), 0, num_nodes[dst_t])
        edge_index_dict[et] = (src, dst)

    model = HeteroGNN(params, node_types, edge_types, num_nodes, target='paper')

    x_dict = {'paper': x_paper[0], 'author': x_author[0]}

    # --- check 1: 'node_and_edge', single sample (torch semantics) ---
    cap_ne = CaptumHeteroModelPallas(model, 'node_and_edge', OUTPUT_IDX, metadata)
    out1 = cap_ne.forward(x_paper, x_author,
                          edge_mask_writes, edge_mask_cites, edge_index_dict)
    out1 = jax.block_until_ready(out1)
    emd = {edge_types[0]: edge_mask_writes[0], edge_types[1]: edge_mask_cites[0]}
    ref1 = reference_forward(params, edge_types, num_nodes,
                             x_dict, edge_index_dict, emd, OUTPUT_IDX)
    assert out1.shape == (1, CLASSES)
    assert jnp.allclose(out1, ref1, rtol=1e-3, atol=1e-3), (out1, ref1)

    # --- check 2: 'edge' mask type with batched perturbation samples (B=3) ---
    B = 3
    mask_w_b = jax.random.normal(next(ki), (B, num_edges[edge_types[0]]), jnp.float32)
    mask_c_b = jax.random.normal(next(ki), (B, num_edges[edge_types[1]]), jnp.float32)
    cap_e = CaptumHeteroModelPallas(model, 'edge', OUTPUT_IDX, metadata)
    out2 = cap_e.forward(mask_w_b, mask_c_b, x_dict, edge_index_dict)
    out2 = jax.block_until_ready(out2)
    assert out2.shape == (B, CLASSES)
    for b in range(B):
        emd_b = {edge_types[0]: mask_w_b[b], edge_types[1]: mask_c_b[b]}
        refb = reference_forward(params, edge_types, num_nodes,
                                 x_dict, edge_index_dict, emd_b, OUTPUT_IDX)
        assert jnp.allclose(out2[b:b + 1], refb, rtol=1e-3, atol=1e-3), (b, out2[b], refb)

    print("KERNEL_OK")
</pallas_src>

<mosaic_0001>
module attributes {stable_mosaic.version = 11 : i64} {
  func.func @kernel(%arg0: i32, %arg1: memref<8xi32, #tpu.memory_space<smem>>, %arg2: memref<8xi32, #tpu.memory_space<smem>>, %arg3: memref<8x8xf32, #tpu.memory_space<vmem>>, %arg4: memref<1x8xf32, #tpu.memory_space<vmem>>, %arg5: memref<8x8xf32, #tpu.memory_space<vmem>>, %arg6: memref<1x8xf32, #tpu.memory_space<vmem>>, %arg7: memref<24x128xf32, #tpu.memory_space<vmem>>, %arg8: memref<1x128xf32, #tpu.memory_space<vmem>>, %arg9: memref<384x128xf32, #tpu.memory_space<vmem>>, %arg10: memref<1x128xf32, #tpu.memory_space<vmem>>, %arg11: memref<128x128xf32, #tpu.memory_space<vmem>>, %arg12: memref<1x128xf32, #tpu.memory_space<vmem>>, %arg13: memref<8x128xf32, #tpu.memory_space<vmem>>, %arg14: memref<8x128xf32, #tpu.memory_space<vmem>>, %arg15: memref<8x128xf32, #tpu.memory_space<vmem>>, %arg16: memref<8x384xf32, #tpu.memory_space<vmem>>) attributes {dimension_semantics = [#tpu.dimension_semantics<parallel>], iteration_bounds = array<i64: 1>, scalar_prefetch = 2 : i64, scratch_operands = 3 : i64, tpu.core_type = #tpu.core_type<tc>, window_params = [{transform_indices = @transform_0, window_bounds = array<i64: 8, 8>}, {pipeline_mode = #tpu.pipeline_mode<synchronous>, transform_indices = @transform_1, window_bounds = array<i64: 1, 8>}, {transform_indices = @transform_2, window_bounds = array<i64: 8, 8>}, {pipeline_mode = #tpu.pipeline_mode<synchronous>, transform_indices = @transform_3, window_bounds = array<i64: 1, 8>}, {pipeline_mode = #tpu.pipeline_mode<synchronous>, transform_indices = @transform_4, window_bounds = array<i64: 24, 128>}, {pipeline_mode = #tpu.pipeline_mode<synchronous>, transform_indices = @transform_5, window_bounds = array<i64: 1, 128>}, {pipeline_mode = #tpu.pipeline_mode<synchronous>, transform_indices = @transform_6, window_bounds = array<i64: 384, 128>}, {pipeline_mode = #tpu.pipeline_mode<synchronous>, transform_indices = @transform_7, window_bounds = array<i64: 1, 128>}, {pipeline_mode = #tpu.pipeline_mode<synchronous>, transform_indices = @transform_8, window_bounds = array<i64: 128, 128>}, {pipeline_mode = #tpu.pipeline_mode<synchronous>, transform_indices = @transform_9, window_bounds = array<i64: 1, 128>}, {transform_indices = @transform_10, window_bounds = array<i64: 8, 128>}]} {
    %c0_i32 = arith.constant 0 : i32
    %c8_i32 = arith.constant 8 : i32
    %0 = arith.muli %c0_i32, %c8_i32 : i32
    %1 = tpu.assume_multiple %0, 8 : i32
    %c0_i32_0 = arith.constant 0 : i32
    %2 = arith.addi %1, %c0_i32_0 : i32
    %3 = arith.index_cast %2 : i32 to index
    %4 = memref.load %arg1[%3] : memref<8xi32, #tpu.memory_space<smem>>
    %5 = arith.index_cast %4 : i32 to index
    %c0 = arith.constant 0 : index
    %6 = vector.load %arg7[%5, %c0] : memref<24x128xf32, #tpu.memory_space<vmem>>, vector<1x128xf32>
    %c1_i32 = arith.constant 1 : i32
    %7 = arith.addi %1, %c1_i32 : i32
    %8 = arith.index_cast %7 : i32 to index
    %9 = memref.load %arg1[%8] : memref<8xi32, #tpu.memory_space<smem>>
    %10 = arith.index_cast %9 : i32 to index
    %c0_1 = arith.constant 0 : index
    %11 = vector.load %arg7[%10, %c0_1] : memref<24x128xf32, #tpu.memory_space<vmem>>, vector<1x128xf32>
    %c2_i32 = arith.constant 2 : i32
    %12 = arith.addi %1, %c2_i32 : i32
    %13 = arith.index_cast %12 : i32 to index
    %14 = memref.load %arg1[%13] : memref<8xi32, #tpu.memory_space<smem>>
    %15 = arith.index_cast %14 : i32 to index
    %c0_2 = arith.constant 0 : index
    %16 = vector.load %arg7[%15, %c0_2] : memref<24x128xf32, #tpu.memory_space<vmem>>, vector<1x128xf32>
    %c3_i32 = arith.constant 3 : i32
    %17 = arith.addi %1, %c3_i32 : i32
    %18 = arith.index_cast %17 : i32 to index
    %19 = memref.load %arg1[%18] : memref<8xi32, #tpu.memory_space<smem>>
    %20 = arith.index_cast %19 : i32 to index
    %c0_3 = arith.constant 0 : index
    %21 = vector.load %arg7[%20, %c0_3] : memref<24x128xf32, #tpu.memory_space<vmem>>, vector<1x128xf32>
    %c4_i32 = arith.constant 4 : i32
    %22 = arith.addi %1, %c4_i32 : i32
    %23 = arith.index_cast %22 : i32 to index
    %24 = memref.load %arg1[%23] : memref<8xi32, #tpu.memory_space<smem>>
    %25 = arith.index_cast %24 : i32 to index
    %c0_4 = arith.constant 0 : index
    %26 = vector.load %arg7[%25, %c0_4] : memref<24x128xf32, #tpu.memory_space<vmem>>, vector<1x128xf32>
    %c5_i32 = arith.constant 5 : i32
    %27 = arith.addi %1, %c5_i32 : i32
    %28 = arith.index_cast %27 : i32 to index
    %29 = memref.load %arg1[%28] : memref<8xi32, #tpu.memory_space<smem>>
    %30 = arith.index_cast %29 : i32 to index
    %c0_5 = arith.constant 0 : index
    %31 = vector.load %arg7[%30, %c0_5] : memref<24x128xf32, #tpu.memory_space<vmem>>, vector<1x128xf32>
    %c6_i32 = arith.constant 6 : i32
    %32 = arith.addi %1, %c6_i32 : i32
    %33 = arith.index_cast %32 : i32 to index
    %34 = memref.load %arg1[%33] : memref<8xi32, #tpu.memory_space<smem>>
    %35 = arith.index_cast %34 : i32 to index
    %c0_6 = arith.constant 0 : index
    %36 = vector.load %arg7[%35, %c0_6] : memref<24x128xf32, #tpu.memory_space<vmem>>, vector<1x128xf32>
    %c7_i32 = arith.constant 7 : i32
    %37 = arith.addi %1, %c7_i32 : i32
    %38 = arith.index_cast %37 : i32 to index
    %39 = memref.load %arg1[%38] : memref<8xi32, #tpu.memory_space<smem>>
    %40 = arith.index_cast %39 : i32 to index
    %c0_7 = arith.constant 0 : index
    %41 = vector.load %arg7[%40, %c0_7] : memref<24x128xf32, #tpu.memory_space<vmem>>, vector<1x128xf32>
    %42 = tpu.concatenate %6, %11, %16, %21, %26, %31, %36, %41 in 0 : vector<1x128xf32>, vector<1x128xf32>, vector<1x128xf32>, vector<1x128xf32>, vector<1x128xf32>, vector<1x128xf32>, vector<1x128xf32>, vector<1x128xf32> -> vector<8x128xf32>
    %43 = arith.index_cast %1 : i32 to index
    %c0_8 = arith.constant 0 : index
    %44 = vector.load %arg14[%43, %c0_8] : memref<8x128xf32, #tpu.memory_space<vmem>>, vector<8x128xf32>
    tpu.vector_store %arg14[%43, %c0_8], %42 {strides = array<i32>} : memref<8x128xf32, #tpu.memory_space<vmem>>, vector<8x128xf32>,
    %c1_i32_9 = arith.constant 1 : i32
    %c0_10 = arith.constant 0 : index
    %c0_11 = arith.constant 0 : index
    %45 = vector.load %arg3[%c0_10, %c0_11] : memref<8x8xf32, #tpu.memory_space<vmem>>, vector<8x8xf32>
    %46 = arith.negf %45 : vector<8x8xf32>
    %47 = math.exp %46 : vector<8x8xf32>
    %cst = arith.constant 1.000000e+00 : f32
    %48 = vector.broadcast %cst : f32 to vector<8x8xf32>
    %49 = arith.addf %48, %47 : vector<8x8xf32>
    %50 = arith.divf %48, %49 : vector<8x8xf32>
    %c0_12 = arith.constant 0 : index
    %c0_13 = arith.constant 0 : index
    %51 = vector.load %arg4[%c0_12, %c0_13] : memref<1x8xf32, #tpu.memory_space<vmem>>, vector<1x8xf32>
    %52 = vector.broadcast %51 : vector<1x8xf32> to vector<8x8xf32>
    %53 = arith.mulf %50, %52 : vector<8x8xf32>
    %c0_14 = arith.constant 0 : index
    %c0_15 = arith.constant 0 : index
    %54 = vector.load %arg14[%c0_14, %c0_15] : memref<8x128xf32, #tpu.memory_space<vmem>>, vector<8x128xf32>
    %cst_16 = arith.constant dense<0.000000e+00> : vector<8x128xf32>
    %55 = tpu.matmul %53, %54, %cst_16 {dimension_numbers = #tpu.dot_dimension_numbers<[1], [0], [0], [1], [0, 0, 1, 1], [], []>} : vector<8x8xf32>, vector<8x128xf32>, vector<8x128xf32> -> vector<8x128xf32>
    %c0_17 = arith.constant 0 : index
    %c0_18 = arith.constant 0 : index
    %56 = vector.load %arg16[%c0_17, %c0_18] : memref<8x384xf32, #tpu.memory_space<vmem>>, vector<8x128xf32>
    tpu.vector_store %arg16[%c0_17, %c0_18], %55 {strides = array<i32>} : memref<8x384xf32, #tpu.memory_space<vmem>>, vector<8x128xf32>,
    %c0_i32_19 = arith.constant 0 : i32
    %c8_i32_20 = arith.constant 8 : i32
    %57 = arith.muli %c0_i32_19, %c8_i32_20 : i32
    %58 = tpu.assume_multiple %57, 8 : i32
    %c0_i32_21 = arith.constant 0 : i32
    %59 = arith.addi %58, %c0_i32_21 : i32
    %60 = arith.index_cast %59 : i32 to index
    %61 = memref.load %arg2[%60] : memref<8xi32, #tpu.memory_space<smem>>
    %62 = arith.index_cast %61 : i32 to index
    %c0_22 = arith.constant 0 : index
    %63 = vector.load %arg7[%62, %c0_22] : memref<24x128xf32, #tpu.memory_space<vmem>>, vector<1x128xf32>
    %c1_i32_23 = arith.constant 1 : i32
    %64 = arith.addi %58, %c1_i32_23 : i32
    %65 = arith.index_cast %64 : i32 to index
    %66 = memref.load %arg2[%65] : memref<8xi32, #tpu.memory_space<smem>>
    %67 = arith.index_cast %66 : i32 to index
    %c0_24 = arith.constant 0 : index
    %68 = vector.load %arg7[%67, %c0_24] : memref<24x128xf32, #tpu.memory_space<vmem>>, vector<1x128xf32>
    %c2_i32_25 = arith.constant 2 : i32
    %69 = arith.addi %58, %c2_i32_25 : i32
    %70 = arith.index_cast %69 : i32 to index
    %71 = memref.load %arg2[%70] : memref<8xi32, #tpu.memory_space<smem>>
    %72 = arith.index_cast %71 : i32 to index
    %c0_26 = arith.constant 0 : index
    %73 = vector.load %arg7[%72, %c0_26] : memref<24x128xf32, #tpu.memory_space<vmem>>, vector<1x128xf32>
    %c3_i32_27 = arith.constant 3 : i32
    %74 = arith.addi %58, %c3_i32_27 : i32
    %75 = arith.index_cast %74 : i32 to index
    %76 = memref.load %arg2[%75] : memref<8xi32, #tpu.memory_space<smem>>
    %77 = arith.index_cast %76 : i32 to index
    %c0_28 = arith.constant 0 : index
    %78 = vector.load %arg7[%77, %c0_28] : memref<24x128xf32, #tpu.memory_space<vmem>>, vector<1x128xf32>
    %c4_i32_29 = arith.constant 4 : i32
    %79 = arith.addi %58, %c4_i32_29 : i32
    %80 = arith.index_cast %79 : i32 to index
    %81 = memref.load %arg2[%80] : memref<8xi32, #tpu.memory_space<smem>>
    %82 = arith.index_cast %81 : i32 to index
    %c0_30 = arith.constant 0 : index
    %83 = vector.load %arg7[%82, %c0_30] : memref<24x128xf32, #tpu.memory_space<vmem>>, vector<1x128xf32>
    %c5_i32_31 = arith.constant 5 : i32
    %84 = arith.addi %58, %c5_i32_31 : i32
    %85 = arith.index_cast %84 : i32 to index
    %86 = memref.load %arg2[%85] : memref<8xi32, #tpu.memory_space<smem>>
    %87 = arith.index_cast %86 : i32 to index
    %c0_32 = arith.constant 0 : index
    %88 = vector.load %arg7[%87, %c0_32] : memref<24x128xf32, #tpu.memory_space<vmem>>, vector<1x128xf32>
    %c6_i32_33 = arith.constant 6 : i32
    %89 = arith.addi %58, %c6_i32_33 : i32
    %90 = arith.index_cast %89 : i32 to index
    %91 = memref.load %arg2[%90] : memref<8xi32, #tpu.memory_space<smem>>
    %92 = arith.index_cast %91 : i32 to index
    %c0_34 = arith.constant 0 : index
    %93 = vector.load %arg7[%92, %c0_34] : memref<24x128xf32, #tpu.memory_space<vmem>>, vector<1x128xf32>
    %c7_i32_35 = arith.constant 7 : i32
    %94 = arith.addi %58, %c7_i32_35 : i32
    %95 = arith.index_cast %94 : i32 to index
    %96 = memref.load %arg2[%95] : memref<8xi32, #tpu.memory_space<smem>>
    %97 = arith.index_cast %96 : i32 to index
    %c0_36 = arith.constant 0 : index
    %98 = vector.load %arg7[%97, %c0_36] : memref<24x128xf32, #tpu.memory_space<vmem>>, vector<1x128xf32>
    %99 = tpu.concatenate %63, %68, %73, %78, %83, %88, %93, %98 in 0 : vector<1x128xf32>, vector<1x128xf32>, vector<1x128xf32>, vector<1x128xf32>, vector<1x128xf32>, vector<1x128xf32>, vector<1x128xf32>, vector<1x128xf32> -> vector<8x128xf32>
    %100 = arith.index_cast %58 : i32 to index
    %c0_37 = arith.constant 0 : index
    %101 = vector.load %arg15[%100, %c0_37] : memref<8x128xf32, #tpu.memory_space<vmem>>, vector<8x128xf32>
    tpu.vector_store %arg15[%100, %c0_37], %99 {strides = array<i32>} : memref<8x128xf32, #tpu.memory_space<vmem>>, vector<8x128xf32>,
    %c1_i32_38 = arith.constant 1 : i32
    %c0_39 = arith.constant 0 : index
    %c0_40 = arith.constant 0 : index
    %102 = vector.load %arg5[%c0_39, %c0_40] : memref<8x8xf32, #tpu.memory_space<vmem>>, vector<8x8xf32>
    %103 = arith.negf %102 : vector<8x8xf32>
    %104 = math.exp %103 : vector<8x8xf32>
    %cst_41 = arith.constant 1.000000e+00 : f32
    %105 = vector.broadcast %cst_41 : f32 to vector<8x8xf32>
    %106 = arith.addf %105, %104 : vector<8x8xf32>
    %107 = arith.divf %105, %106 : vector<8x8xf32>
    %c0_42 = arith.constant 0 : index
    %c0_43 = arith.constant 0 : index
    %108 = vector.load %arg6[%c0_42, %c0_43] : memref<1x8xf32, #tpu.memory_space<vmem>>, vector<1x8xf32>
    %109 = vector.broadcast %108 : vector<1x8xf32> to vector<8x8xf32>
    %110 = arith.mulf %107, %109 : vector<8x8xf32>
    %c0_44 = arith.constant 0 : index
    %c0_45 = arith.constant 0 : index
    %111 = vector.load %arg15[%c0_44, %c0_45] : memref<8x128xf32, #tpu.memory_space<vmem>>, vector<8x128xf32>
    %cst_46 = arith.constant dense<0.000000e+00> : vector<8x128xf32>
    %112 = tpu.matmul %110, %111, %cst_46 {dimension_numbers = #tpu.dot_dimension_numbers<[1], [0], [0], [1], [0, 0, 1, 1], [], []>} : vector<8x8xf32>, vector<8x128xf32>, vector<8x128xf32> -> vector<8x128xf32>
    %c0_47 = arith.constant 0 : index
    %c128 = arith.constant 128 : index
    %113 = vector.load %arg16[%c0_47, %c128] : memref<8x384xf32, #tpu.memory_space<vmem>>, vector<8x128xf32>
    tpu.vector_store %arg16[%c0_47, %c128], %112 {strides = array<i32>} : memref<8x384xf32, #tpu.memory_space<vmem>>, vector<8x128xf32>,
    %c0_48 = arith.constant 0 : index
    %c0_49 = arith.constant 0 : index
    %114 = vector.load %arg8[%c0_48, %c0_49] : memref<1x128xf32, #tpu.memory_space<vmem>>, vector<1x128xf32>
    %115 = vector.shape_cast %114 : vector<1x128xf32> to vector<1x128xf32>
    %116 = vector.broadcast %115 : vector<1x128xf32> to vector<8x128xf32>
    %c0_50 = arith.constant 0 : index
    %c256 = arith.constant 256 : index
    %117 = vector.load %arg16[%c0_50, %c256] : memref<8x384xf32, #tpu.memory_space<vmem>>, vector<8x128xf32>
    tpu.vector_store %arg16[%c0_50, %c256], %116 {strides = array<i32>} : memref<8x384xf32, #tpu.memory_space<vmem>>, vector<8x128xf32>,
    %c0_51 = arith.constant 0 : index
    %c0_52 = arith.constant 0 : index
    %118 = vector.load %arg16[%c0_51, %c0_52] : memref<8x384xf32, #tpu.memory_space<vmem>>, vector<8x384xf32>
    %c0_53 = arith.constant 0 : index
    %c0_54 = arith.constant 0 : index
    %119 = vector.load %arg9[%c0_53, %c0_54] : memref<384x128xf32, #tpu.memory_space<vmem>>, vector<384x128xf32>
    %cst_55 = arith.constant dense<0.000000e+00> : vector<8x128xf32>
    %120 = tpu.matmul %118, %119, %cst_55 {dimension_numbers = #tpu.dot_dimension_numbers<[1], [0], [0], [1], [0, 0, 1, 1], [], []>} : vector<8x384xf32>, vector<384x128xf32>, vector<8x128xf32> -> vector<8x128xf32>
    %c0_56 = arith.constant 0 : index
    %c0_57 = arith.constant 0 : index
    %121 = vector.load %arg10[%c0_56, %c0_57] : memref<1x128xf32, #tpu.memory_space<vmem>>, vector<1x128xf32>
    %122 = vector.broadcast %121 : vector<1x128xf32> to vector<8x128xf32>
    %123 = arith.addf %120, %122 : vector<8x128xf32>
    %cst_58 = arith.constant 0.000000e+00 : f32
    %124 = vector.broadcast %cst_58 : f32 to vector<8x128xf32>
    %125 = arith.maximumf %123, %124 : vector<8x128xf32>
    %c0_59 = arith.constant 0 : index
    %c0_60 = arith.constant 0 : index
    %126 = vector.load %arg11[%c0_59, %c0_60] : memref<128x128xf32, #tpu.memory_space<vmem>>, vector<128x128xf32>
    %cst_61 = arith.constant dense<0.000000e+00> : vector<8x128xf32>
    %127 = tpu.matmul %125, %126, %cst_61 {dimension_numbers = #tpu.dot_dimension_numbers<[1], [0], [0], [1], [0, 0, 1, 1], [], []>} : vector<8x128xf32>, vector<128x128xf32>, vector<8x128xf32> -> vector<8x128xf32>
    %c0_62 = arith.constant 0 : index
    %c0_63 = arith.constant 0 : index
    %128 = vector.load %arg12[%c0_62, %c0_63] : memref<1x128xf32, #tpu.memory_space<vmem>>, vector<1x128xf32>
    %129 = vector.broadcast %128 : vector<1x128xf32> to vector<8x128xf32>
    %130 = arith.addf %127, %129 : vector<8x128xf32>
    %c0_64 = arith.constant 0 : index
    %c0_65 = arith.constant 0 : index
    %131 = vector.load %arg13[%c0_64, %c0_65] : memref<8x128xf32, #tpu.memory_space<vmem>>, vector<8x128xf32>
    tpu.vector_store %arg13[%c0_64, %c0_65], %130 {strides = array<i32>} : memref<8x128xf32, #tpu.memory_space<vmem>>, vector<8x128xf32>,
    return
  }
  func.func @transform_0(%arg0: i32, %arg1: memref<8xi32, #tpu.memory_space<smem>>, %arg2: memref<8xi32, #tpu.memory_space<smem>>) -> (i32, i32) {
    %c0_i32 = arith.constant 0 : i32
    %c0_i32_0 = arith.constant 0 : i32
    return %arg0, %c0_i32 : i32, i32
  }
  func.func @transform_1(%arg0: i32, %arg1: memref<8xi32, #tpu.memory_space<smem>>, %arg2: memref<8xi32, #tpu.memory_space<smem>>) -> (i32, i32) {
    %c0_i32 = arith.constant 0 : i32
    %c0_i32_0 = arith.constant 0 : i32
    %c0_i32_1 = arith.constant 0 : i32
    return %c0_i32, %c0_i32_0 : i32, i32
  }
  func.func @transform_2(%arg0: i32, %arg1: memref<8xi32, #tpu.memory_space<smem>>, %arg2: memref<8xi32, #tpu.memory_space<smem>>) -> (i32, i32) {
    %c0_i32 = arith.constant 0 : i32
    %c0_i32_0 = arith.constant 0 : i32
    return %arg0, %c0_i32 : i32, i32
  }
  func.func @transform_3(%arg0: i32, %arg1: memref<8xi32, #tpu.memory_space<smem>>, %arg2: memref<8xi32, #tpu.memory_space<smem>>) -> (i32, i32) {
    %c0_i32 = arith.constant 0 : i32
    %c0_i32_0 = arith.constant 0 : i32
    %c0_i32_1 = arith.constant 0 : i32
    return %c0_i32, %c0_i32_0 : i32, i32
  }
  func.func @transform_4(%arg0: i32, %arg1: memref<8xi32, #tpu.memory_space<smem>>, %arg2: memref<8xi32, #tpu.memory_space<smem>>) -> (i32, i32) {
    %c0_i32 = arith.constant 0 : i32
    %c0_i32_0 = arith.constant 0 : i32
    %c0_i32_1 = arith.constant 0 : i32
    return %c0_i32, %c0_i32_0 : i32, i32
  }
  func.func @transform_5(%arg0: i32, %arg1: memref<8xi32, #tpu.memory_space<smem>>, %arg2: memref<8xi32, #tpu.memory_space<smem>>) -> (i32, i32) {
    %c0_i32 = arith.constant 0 : i32
    %c0_i32_0 = arith.constant 0 : i32
    %c0_i32_1 = arith.constant 0 : i32
    return %c0_i32, %c0_i32_0 : i32, i32
  }
  func.func @transform_6(%arg0: i32, %arg1: memref<8xi32, #tpu.memory_space<smem>>, %arg2: memref<8xi32, #tpu.memory_space<smem>>) -> (i32, i32) {
    %c0_i32 = arith.constant 0 : i32
    %c0_i32_0 = arith.constant 0 : i32
    %c0_i32_1 = arith.constant 0 : i32
    return %c0_i32, %c0_i32_0 : i32, i32
  }
  func.func @transform_7(%arg0: i32, %arg1: memref<8xi32, #tpu.memory_space<smem>>, %arg2: memref<8xi32, #tpu.memory_space<smem>>) -> (i32, i32) {
    %c0_i32 = arith.constant 0 : i32
    %c0_i32_0 = arith.constant 0 : i32
    %c0_i32_1 = arith.constant 0 : i32
    return %c0_i32, %c0_i32_0 : i32, i32
  }
  func.func @transform_8(%arg0: i32, %arg1: memref<8xi32, #tpu.memory_space<smem>>, %arg2: memref<8xi32, #tpu.memory_space<smem>>) -> (i32, i32) {
    %c0_i32 = arith.constant 0 : i32
    %c0_i32_0 = arith.constant 0 : i32
    %c0_i32_1 = arith.constant 0 : i32
    return %c0_i32, %c0_i32_0 : i32, i32
  }
  func.func @transform_9(%arg0: i32, %arg1: memref<8xi32, #tpu.memory_space<smem>>, %arg2: memref<8xi32, #tpu.memory_space<smem>>) -> (i32, i32) {
    %c0_i32 = arith.constant 0 : i32
    %c0_i32_0 = arith.constant 0 : i32
    %c0_i32_1 = arith.constant 0 : i32
    return %c0_i32, %c0_i32_0 : i32, i32
  }
  func.func @transform_10(%arg0: i32, %arg1: memref<8xi32, #tpu.memory_space<smem>>, %arg2: memref<8xi32, #tpu.memory_space<smem>>) -> (i32, i32) {
    %c0_i32 = arith.constant 0 : i32
    %c0_i32_0 = arith.constant 0 : i32
    return %arg0, %c0_i32 : i32, i32
  }
}

</mosaic_0001>

<llo_original>
// kernel: tpu_custom_call.1
$region0: #{tpu_custom_call.1}
  #allocation0 [shape = 'u32[]', space=smem, size = 0x4, offset = 0x4, fixed_abs, tag = 'smem constant byte address 0x4 - core index']
  #allocation1 [shape = 'u32[144,128]{1,0:T(1,128)}', space=vmem, size = 0x12000, scoped, tag = 'internal scratch']
  #allocation2 [shape = 'f32[8,128]{1,0:T(8,128)}', space=vmem, size = 0x1000, scoped, tag = 'scratch operand']
  #allocation3 [shape = 'f32[8,128]{1,0:T(8,128)}', space=vmem, size = 0x1000, scoped, tag = 'scratch operand']
  #allocation4 [shape = 'f32[8,384]{1,0:T(8,128)}', space=vmem, size = 0x3000, scoped, tag = 'scratch operand']
  #allocation5 [shape = 's32[1]{0}', space=sflag, size = 0x4, scoped, tag = 'scoped memory for tpu_custom_call.1']
  #allocation6 [shape = 'u8[512]{0}', space=smem, size = 0x200, scoped, tag = 'prefetched SMEM operand 0']
  #allocation7 [shape = 'u8[512]{0}', space=smem, size = 0x200, scoped, tag = 'prefetched SMEM operand 1']
  %s0 = inlined_call_operand.hbm [shape: s32[8], index: 0, kind: input, shape index: {}]
  %s1 = inlined_call_operand.vmem [shape: s32[8], index: 1, kind: input, shape index: {}]
  %s2 = inlined_call_operand.hbm [shape: f32[8,8], index: 2, kind: input, shape index: {}]
  %s3 = inlined_call_operand.vmem [shape: f32[1,8], index: 3, kind: input, shape index: {}]
  %s4 = inlined_call_operand.vmem [shape: f32[8,8], index: 4, kind: input, shape index: {}]
  %s5 = inlined_call_operand.vmem [shape: f32[1,8], index: 5, kind: input, shape index: {}]
  %s6 = inlined_call_operand.hbm [shape: f32[24,128], index: 6, kind: input, shape index: {}]
  %s7 = inlined_call_operand.vmem [shape: f32[1,128], index: 7, kind: input, shape index: {}]
  %s8 = inlined_call_operand.hbm [shape: f32[384,128], index: 8, kind: input, shape index: {}]
  %s9 = inlined_call_operand.vmem [shape: f32[1,128], index: 9, kind: input, shape index: {}]
  %s10 = inlined_call_operand.hbm [shape: f32[128,128], index: 10, kind: input, shape index: {}]
  %s11 = inlined_call_operand.vmem [shape: f32[1,128], index: 11, kind: input, shape index: {}]
  %s12 = inlined_call_operand.hbm [shape: f32[8,128], index: 12, kind: output, shape index: {}]
  %s13 = sld [smem:[#allocation0]]
  $region66: #{tpu_custom_call.1} parent=0
    _
  %s15 = ssub.s32 1, %s13
  %s16 = scalar_select 0, %s15, %s13
  %18 = dma.hbm_to_smem %s0, 16, [#allocation6], [#allocation5]
  %s19 = sshll.u32 %s1, 4
  %s20 = int_to_ptr.vmem [resolvable:$true] %s19
  %22 = dma.vmem_to_smem %s20, 16, [#allocation7], [#allocation5]
  %23 = dma.done [#allocation5], 32
  %24 = sfence
  $region1: #{tpu_custom_call.1} parent=0
    #allocation8 [shape = 'u8[4096]{0}', space=vmem, size = 0x1000, scoped, tag = 'input window, operand 2, single buffered']
    #allocation9 [shape = 's32[1]{0}', space=sflag, size = 0x4, scoped, tag = 'scoped memory for tpu_custom_call.1']
    #allocation10 [shape = 's32[1]{0}', space=sflag, size = 0x4, scoped, tag = 'scoped memory for tpu_custom_call.1']
    #allocation11 [shape = 'u8[12288]{0}', space=vmem, size = 0x3000, scoped, tag = 'input window, operand 6, single buffered']
    #allocation12 [shape = 's32[1]{0}', space=sflag, size = 0x4, scoped, tag = 'scoped memory for tpu_custom_call.1']
    #allocation13 [shape = 'u8[196608]{0}', space=vmem, size = 0x30000, scoped, tag = 'input window, operand 8, single buffered']
    #allocation14 [shape = 'u8[65536]{0}', space=vmem, size = 0x10000, scoped, tag = 'input window, operand 10, single buffered']
    #allocation15 [shape = 's32[1]{0}', space=sflag, size = 0x4, scoped, tag = 'scoped memory for tpu_custom_call.1']
    #allocation16 [shape = 'u8[4096]{0}', space=vmem, size = 0x1000, scoped, tag = 'output window, operand 0, single buffered']
    %25 = vsyncpa [#allocation9], 0
    %26 = vsyncpa [#allocation12], 0
    %27 = vsyncpa [#allocation15], 0
    %28 = vsyncpa [#allocation10], 0
    // Predicated region
    $region2: #{tpu_custom_call.1} parent=1 // pred_check
      _
    $region3: #{tpu_custom_call.1} parent=1 // pred_check_branch
      %30 = sbr.rel (0) target = $region5
    $region4: #{tpu_custom_call.1} parent=1 // pred_region
      %s32 = ssub.s32 128, 128
      %33 = vsyncadd [#allocation9], %s32
      %s35 = sshll.u32 [#allocation8], 4
      %s36 = int_to_ptr.vmem [resolvable:$true] %s35
      %38 = dma.hbm_to_vmem [thread:$0]  %s2, 128, %s36, [#allocation9]
    $region5: #{tpu_custom_call.1} parent=1 // pred_fallthru
      _
    // Predicated region
    $region6: #{tpu_custom_call.1} parent=1 // pred_check
      _
    $region7: #{tpu_custom_call.1} parent=1 // pred_check_branch
      %40 = sbr.rel (0) target = $region9
    $region8: #{tpu_custom_call.1} parent=1 // pred_region
      _
    $region9: #{tpu_custom_call.1} parent=1 // pred_fallthru
      _
    // Predicated region
    $region10: #{tpu_custom_call.1} parent=1 // pred_check
      _
    $region11: #{tpu_custom_call.1} parent=1 // pred_check_branch
      %42 = sbr.rel (0) target = $region13
    $region12: #{tpu_custom_call.1} parent=1 // pred_region
      _
    $region13: #{tpu_custom_call.1} parent=1 // pred_fallthru
      _
    // Predicated region
    $region14: #{tpu_custom_call.1} parent=1 // pred_check
      _
    $region15: #{tpu_custom_call.1} parent=1 // pred_check_branch
      %44 = sbr.rel (0) target = $region17
    $region16: #{tpu_custom_call.1} parent=1 // pred_region
      _
    $region17: #{tpu_custom_call.1} parent=1 // pred_fallthru
      _
    // Predicated region
    $region18: #{tpu_custom_call.1} parent=1 // pred_check
      _
    $region19: #{tpu_custom_call.1} parent=1 // pred_check_branch
      %46 = sbr.rel (0) target = $region21
    $region20: #{tpu_custom_call.1} parent=1 // pred_region
      %s48 = ssub.s32 384, 384
      %49 = vsyncadd [#allocation12], %s48
      %s50 = sshll.u32 [#allocation11], 4
      %s51 = int_to_ptr.vmem [resolvable:$true] %s50
      %56 = dma.hbm_to_vmem [thread:$0]  %s6, 384, %s51, [#allocation12], 128, 128, 8
    $region21: #{tpu_custom_call.1} parent=1 // pred_fallthru
      _
    // Predicated region
    $region22: #{tpu_custom_call.1} parent=1 // pred_check
      _
    $region23: #{tpu_custom_call.1} parent=1 // pred_check_branch
      %58 = sbr.rel (0) target = $region25
    $region24: #{tpu_custom_call.1} parent=1 // pred_region
      _
    $region25: #{tpu_custom_call.1} parent=1 // pred_fallthru
      _
    // Predicated region
    $region26: #{tpu_custom_call.1} parent=1 // pred_check
      _
    $region27: #{tpu_custom_call.1} parent=1 // pred_check_branch
      %60 = sbr.rel (0) target = $region29
    $region28: #{tpu_custom_call.1} parent=1 // pred_region
      %s62 = ssub.s32 6144, 6144
      %63 = vsyncadd [#allocation12], %s62
      %s64 = sshll.u32 [#allocation13], 4
      %s65 = int_to_ptr.vmem [resolvable:$true] %s64
      %70 = dma.hbm_to_vmem [thread:$0]  %s8, 6144, %s65, [#allocation12], 128, 128, 8
    $region29: #{tpu_custom_call.1} parent=1 // pred_fallthru
      _
    // Predicated region
    $region30: #{tpu_custom_call.1} parent=1 // pred_check
      _
    $region31: #{tpu_custom_call.1} parent=1 // pred_check_branch
      %72 = sbr.rel (0) target = $region33
    $region32: #{tpu_custom_call.1} parent=1 // pred_region
      _
    $region33: #{tpu_custom_call.1} parent=1 // pred_fallthru
      _
    // Predicated region
    $region34: #{tpu_custom_call.1} parent=1 // pred_check
      _
    $region35: #{tpu_custom_call.1} parent=1 // pred_check_branch
      %74 = sbr.rel (0) target = $region37
    $region36: #{tpu_custom_call.1} parent=1 // pred_region
      %s76 = ssub.s32 2048, 2048
      %77 = vsyncadd [#allocation15], %s76
      %s78 = sshll.u32 [#allocation14], 4
      %s79 = int_to_ptr.vmem [resolvable:$true] %s78
      %84 = dma.hbm_to_vmem [thread:$0]  %s10, 2048, %s79, [#allocation15], 128, 128, 8
    $region37: #{tpu_custom_call.1} parent=1 // pred_fallthru
      _
    // Predicated region
    $region38: #{tpu_custom_call.1} parent=1 // pred_check
      _
    $region39: #{tpu_custom_call.1} parent=1 // pred_check_branch
      %86 = sbr.rel (0) target = $region41
    $region40: #{tpu_custom_call.1} parent=1 // pred_region
      _
    $region41: #{tpu_custom_call.1} parent=1 // pred_fallthru
      _
    // Predicated region
    $region42: #{tpu_custom_call.1} parent=1 // pred_check
      _
    $region43: #{tpu_custom_call.1} parent=1 // pred_check_branch
      %88 = sbr.rel (0) target = $region45
    $region44: #{tpu_custom_call.1} parent=1 // pred_region
      %89 = dma.done [#allocation9], 128
    $region45: #{tpu_custom_call.1} parent=1 // pred_fallthru
      _
    // Predicated region
    $region46: #{tpu_custom_call.1} parent=1 // pred_check
      _
    $region47: #{tpu_custom_call.1} parent=1 // pred_check_branch
      %91 = sbr.rel (0) target = $region49
    $region48: #{tpu_custom_call.1} parent=1 // pred_region
      %92 = dma.done [#allocation12], 384
    $region49: #{tpu_custom_call.1} parent=1 // pred_fallthru
      _
    // Predicated region
    $region50: #{tpu_custom_call.1} parent=1 // pred_check
      _
    $region51: #{tpu_custom_call.1} parent=1 // pred_check_branch
      %94 = sbr.rel (0) target = $region53
    $region52: #{tpu_custom_call.1} parent=1 // pred_region
      %95 = dma.done [#allocation12], 6144
    $region53: #{tpu_custom_call.1} parent=1 // pred_fallthru
      _
    // Predicated region
    $region54: #{tpu_custom_call.1} parent=1 // pred_check
      _
    $region55: #{tpu_custom_call.1} parent=1 // pred_check_branch
      %97 = sbr.rel (0) target = $region57
    $region56: #{tpu_custom_call.1} parent=1 // pred_region
      %98 = dma.done [#allocation15], 2048
    $region57: #{tpu_custom_call.1} parent=1 // pred_fallthru
      _
    %s99 = sld [smem:[#allocation6]]
    %s100 = scalar_lea.vmem [#allocation11], %s99
    %v101 = vld [vmem:[%s100] sm:$0x1]
    %s102 = sadd.s32 0, 1
    %s103 = sld [smem:[#allocation6 + %s102]]
    %s104 = scalar_lea.vmem [#allocation11], %s103
    %v105 = vld [vmem:[%s104] sm:$0x1]
    %s106 = sadd.s32 0, 2
    %s107 = sld [smem:[#allocation6 + %s106]]
    %s108 = scalar_lea.vmem [#allocation11], %s107
    %v109 = vld [vmem:[%s108] sm:$0x1]
    %s110 = sadd.s32 0, 3
    %s111 = sld [smem:[#allocation6 + %s110]]
    %s112 = scalar_lea.vmem [#allocation11], %s111
    %v113 = vld [vmem:[%s112] sm:$0x1]
    %s114 = sadd.s32 0, 4
    %s115 = sld [smem:[#allocation6 + %s114]]
    %s116 = scalar_lea.vmem [#allocation11], %s115
    %v117 = vld [vmem:[%s116] sm:$0x1]
    %s118 = sadd.s32 0, 5
    %s119 = sld [smem:[#allocation6 + %s118]]
    %s120 = scalar_lea.vmem [#allocation11], %s119
    %v121 = vld [vmem:[%s120] sm:$0x1]
    %s122 = sadd.s32 0, 6
    %s123 = sld [smem:[#allocation6 + %s122]]
    %s124 = scalar_lea.vmem [#allocation11], %s123
    %v125 = vld [vmem:[%s124] sm:$0x1]
    %s126 = sadd.s32 0, 7
    %s127 = sld [smem:[#allocation6 + %s126]]
    %s128 = scalar_lea.vmem [#allocation11], %s127
    %v129 = vld [vmem:[%s128] sm:$0x1]
    %v131 = vrot.slane %v105, 7
    %v134 = vrot.slane %v109, 6
    %v137 = vrot.slane %v113, 5
    %v140 = vrot.slane %v117, 4
    %v143 = vrot.slane %v121, 3
    %v146 = vrot.slane %v125, 2
    %v149 = vrot.slane %v129, 1
    %vm151 = vcmask 1040384
    %v152 = vsel %vm151, %v101, %v131
    %vm153 = vcmask 1041408
    %v154 = vsel %vm153, %v152, %v134
    %vm155 = vcmask 1042432
    %v156 = vsel %vm155, %v154, %v137
    %vm157 = vcmask 1043456
    %v158 = vsel %vm157, %v156, %v140
    %vm159 = vcmask 1044480
    %v160 = vsel %vm159, %v158, %v143
    %vm161 = vcmask 1045504
    %v162 = vsel %vm161, %v160, %v146
    %vm163 = vcmask 1046528
    %v164 = vsel %vm163, %v162, %v149
    %165 = vst [vmem:[#allocation2] sm:$0xff] %v164
    %v166 = vld [vmem:[#allocation8] sm:$0xff]
    %v167 = vxor.u32 %v166, 2147483648
    %v168 = vmul.f32 %v167, 1.442695
    %v169 = vpow.pop %v168
    %v170 = vadd.f32 %v169, 1.0
    %v171 = vrcp.pop %v170
    %v172 = vmul.f32 1.0, %v171
    %v173 = vld [vmem:[%s3] sm:$0x1]
    %v175 = vlaneseq
    %v176 = vshrl.u32 %v175, 7
    %v177 = vsub.s32 0, %v176
    %v178 = vrot.slane %v173, %v177
    %v180 = vmul.f32 %v172, %v178
    %v181 = vld [vmem:[#allocation2] sm:$0xff]
    %vm182 = vcmask 64512
    %v184 = vsel %vm182, %v180, 0
    %186 = vmatprep.subr.mxu0 0.0
    %187 = vmatpush1.msra.mxu0 %v181
    %188 = vmatprep.subr.mxu0 0.0
    %189 = vmatpush1.msra.mxu0 0.0
    %190 = vmatprep.subr.mxu0 0.0
    %191 = vmatpush1.msra.mxu0 0.0
    %192 = vmatprep.subr.mxu0 0.0
    %193 = vmatpush1.msra.mxu0 0.0
    %194 = vmatprep.subr.mxu0 0.0
    %195 = vmatpush1.msra.mxu0 0.0
    %196 = vmatprep.subr.mxu0 0.0
    %197 = vmatpush1.msra.mxu0 0.0
    %198 = vmatprep.subr.mxu0 0.0
    %199 = vmatpush1.msra.mxu0 0.0
    %200 = vmatprep.subr.mxu0 0.0
    %201 = vmatpush1.msra.mxu0 0.0
    %202 = vmatprep.subr.mxu0 0.0
    %203 = vmatpush1.msra.mxu0 0.0
    %204 = vmatprep.subr.mxu0 0.0
    %205 = vmatpush1.msra.mxu0 0.0
    %206 = vmatprep.subr.mxu0 0.0
    %207 = vmatpush1.msra.mxu0 0.0
    %208 = vmatprep.subr.mxu0 0.0
    %209 = vmatpush1.msra.mxu0 0.0
    %210 = vmatprep.subr.mxu0 0.0
    %211 = vmatpush1.msra.mxu0 0.0
    %212 = vmatprep.subr.mxu0 0.0
    %213 = vmatpush1.msra.mxu0 0.0
    %214 = vmatprep.subr.mxu0 0.0
    %215 = vmatpush1.msra.mxu0 0.0
    %216 = vmatprep.subr.mxu0 0.0
    %217 = vmatpush1.msra.mxu0 0.0
    %218 = vmatprep.subr.mxu0 0.0
    %219 = vmatpush1.msra.mxu0 0.0
    %220 = vmatprep.subr.mxu0 0.0
    %221 = vmatpush1.msra.mxu0 0.0
    %222 = vmatprep.subr.mxu0 0.0
    %223 = vmatpush1.msra.mxu0 0.0
    %224 = vmatprep.subr.mxu0 0.0
    %225 = vmatpush1.msra.mxu0 0.0
    %226 = vmatprep.subr.mxu0 0.0
    %227 = vmatpush1.msra.mxu0 0.0
    %228 = vmatprep.subr.mxu0 0.0
    %229 = vmatpush1.msra.mxu0 0.0
    %230 = vmatprep.subr.mxu0 0.0
    %231 = vmatpush1.msra.mxu0 0.0
    %232 = vmatprep.subr.mxu0 0.0
    %233 = vmatpush1.msra.mxu0 0.0
    %234 = vmatprep.subr.mxu0 0.0
    %235 = vmatpush1.msra.mxu0 0.0
    %236 = vmatprep.subr.mxu0 0.0
    %237 = vmatpush1.msra.mxu0 0.0
    %238 = vmatprep.subr.mxu0 0.0
    %239 = vmatpush1.msra.mxu0 0.0
    %240 = vmatprep.subr.mxu0 0.0
    %241 = vmatpush1.msra.mxu0 0.0
    %242 = vmatprep.subr.mxu0 0.0
    %243 = vmatpush1.msra.mxu0 0.0
    %244 = vmatprep.subr.mxu0 0.0
    %245 = vmatpush1.msra.mxu0 0.0
    %246 = vmatprep.subr.mxu0 0.0
    %247 = vmatpush1.msra.mxu0 0.0
    %248 = vmatprep.subr.mxu0 0.0
    %249 = vmatpush1.msra.mxu0 0.0
    %250 = vmatprep.mubr.f32.mxu0 0.0
    %251 = vmatmul.mubr.f32.gmra.mrb[0].mxu0 %v184
    %v252 = vpop.f32.mrb[0].mxu0
    %v253 = vadd.f32 0.0, %v252
    %v254 = vpop.f32.mrb[0].mxu0
    %255 = vdwg.mxu0
    %256 = vst [vmem:[#allocation4] sm:$0xff] %v253
    %s257 = sld [smem:[#allocation7]]
    %s258 = scalar_lea.vmem [#allocation11], %s257
    %v259 = vld [vmem:[%s258] sm:$0x1]
    %s260 = sld [smem:[#allocation7 + %s102]]
    %s261 = scalar_lea.vmem [#allocation11], %s260
    %v262 = vld [vmem:[%s261] sm:$0x1]
    %s263 = sld [smem:[#allocation7 + %s106]]
    %s264 = scalar_lea.vmem [#allocation11], %s263
    %v265 = vld [vmem:[%s264] sm:$0x1]
    %s266 = sld [smem:[#allocation7 + %s110]]
    %s267 = scalar_lea.vmem [#allocation11], %s266
    %v268 = vld [vmem:[%s267] sm:$0x1]
    %s269 = sld [smem:[#allocation7 + %s114]]
    %s270 = scalar_lea.vmem [#allocation11], %s269
    %v271 = vld [vmem:[%s270] sm:$0x1]
    %s272 = sld [smem:[#allocation7 + %s118]]
    %s273 = scalar_lea.vmem [#allocation11], %s272
    %v274 = vld [vmem:[%s273] sm:$0x1]
    %s275 = sld [smem:[#allocation7 + %s122]]
    %s276 = scalar_lea.vmem [#allocation11], %s275
    %v277 = vld [vmem:[%s276] sm:$0x1]
    %s278 = sld [smem:[#allocation7 + %s126]]
    %s279 = scalar_lea.vmem [#allocation11], %s278
    %v280 = vld [vmem:[%s279] sm:$0x1]
    %v282 = vrot.slane %v262, 7
    %v285 = vrot.slane %v265, 6
    %v288 = vrot.slane %v268, 5
    %v291 = vrot.slane %v271, 4
    %v294 = vrot.slane %v274, 3
    %v297 = vrot.slane %v277, 2
    %v300 = vrot.slane %v280, 1
    %v302 = vsel %vm151, %v259, %v282
    %v303 = vsel %vm153, %v302, %v285
    %v304 = vsel %vm155, %v303, %v288
    %v305 = vsel %vm157, %v304, %v291
    %v306 = vsel %vm159, %v305, %v294
    %v307 = vsel %vm161, %v306, %v297
    %v308 = vsel %vm163, %v307, %v300
    %309 = vst [vmem:[#allocation3] sm:$0xff] %v308
    %v310 = vld [vmem:[%s4] sm:$0xff]
    %v311 = vxor.u32 %v310, 2147483648
    %v312 = vmul.f32 %v311, 1.442695
    %v313 = vpow.pop %v312
    %v314 = vadd.f32 %v313, 1.0
    %v315 = vrcp.pop %v314
    %v316 = vmul.f32 1.0, %v315
    %v317 = vld [vmem:[%s5] sm:$0x1]
    %v319 = vlaneseq
    %v320 = vshrl.u32 %v319, 7
    %v321 = vsub.s32 0, %v320
    %v322 = vrot.slane %v317, %v321
    %v324 = vmul.f32 %v316, %v322
    %v325 = vld [vmem:[#allocation3] sm:$0xff]
    %v327 = vsel %vm182, %v324, 0
    %329 = vmatprep.subr.mxu0 0.0
    %330 = vmatpush1.msra.mxu0 %v325
    %331 = vmatprep.subr.mxu0 0.0
    %332 = vmatpush1.msra.mxu0 0.0
    %333 = vmatprep.subr.mxu0 0.0
    %334 = vmatpush1.msra.mxu0 0.0
    %335 = vmatprep.subr.mxu0 0.0
    %336 = vmatpush1.msra.mxu0 0.0
    %337 = vmatprep.subr.mxu0 0.0
    %338 = vmatpush1.msra.mxu0 0.0
    %339 = vmatprep.subr.mxu0 0.0
    %340 = vmatpush1.msra.mxu0 0.0
    %341 = vmatprep.subr.mxu0 0.0
    %342 = vmatpush1.msra.mxu0 0.0
    %343 = vmatprep.subr.mxu0 0.0
    %344 = vmatpush1.msra.mxu0 0.0
    %345 = vmatprep.subr.mxu0 0.0
    %346 = vmatpush1.msra.mxu0 0.0
    %347 = vmatprep.subr.mxu0 0.0
    %348 = vmatpush1.msra.mxu0 0.0
    %349 = vmatprep.subr.mxu0 0.0
    %350 = vmatpush1.msra.mxu0 0.0
    %351 = vmatprep.subr.mxu0 0.0
    %352 = vmatpush1.msra.mxu0 0.0
    %353 = vmatprep.subr.mxu0 0.0
    %354 = vmatpush1.msra.mxu0 0.0
    %355 = vmatprep.subr.mxu0 0.0
    %356 = vmatpush1.msra.mxu0 0.0
    %357 = vmatprep.subr.mxu0 0.0
    %358 = vmatpush1.msra.mxu0 0.0
    %359 = vmatprep.subr.mxu0 0.0
    %360 = vmatpush1.msra.mxu0 0.0
    %361 = vmatprep.subr.mxu0 0.0
    %362 = vmatpush1.msra.mxu0 0.0
    %363 = vmatprep.subr.mxu0 0.0
    %364 = vmatpush1.msra.mxu0 0.0
    %365 = vmatprep.subr.mxu0 0.0
    %366 = vmatpush1.msra.mxu0 0.0
    %367 = vmatprep.subr.mxu0 0.0
    %368 = vmatpush1.msra.mxu0 0.0
    %369 = vmatprep.subr.mxu0 0.0
    %370 = vmatpush1.msra.mxu0 0.0
    %371 = vmatprep.subr.mxu0 0.0
    %372 = vmatpush1.msra.mxu0 0.0
    %373 = vmatprep.subr.mxu0 0.0
    %374 = vmatpush1.msra.mxu0 0.0
    %375 = vmatprep.subr.mxu0 0.0
    %376 = vmatpush1.msra.mxu0 0.0
    %377 = vmatprep.subr.mxu0 0.0
    %378 = vmatpush1.msra.mxu0 0.0
    %379 = vmatprep.subr.mxu0 0.0
    %380 = vmatpush1.msra.mxu0 0.0
    %381 = vmatprep.subr.mxu0 0.0
    %382 = vmatpush1.msra.mxu0 0.0
    %383 = vmatprep.subr.mxu0 0.0
    %384 = vmatpush1.msra.mxu0 0.0
    %385 = vmatprep.subr.mxu0 0.0
    %386 = vmatpush1.msra.mxu0 0.0
    %387 = vmatprep.subr.mxu0 0.0
    %388 = vmatpush1.msra.mxu0 0.0
    %389 = vmatprep.subr.mxu0 0.0
    %390 = vmatpush1.msra.mxu0 0.0
    %391 = vmatprep.subr.mxu0 0.0
    %392 = vmatpush1.msra.mxu0 0.0
    %393 = vmatprep.mubr.f32.mxu0 0.0
    %394 = vmatmul.mubr.f32.gmra.mrb[0].mxu0 %v327
    %v395 = vpop.f32.mrb[0].mxu0
    %v396 = vadd.f32 0.0, %v395
    %v397 = vpop.f32.mrb[0].mxu0
    %398 = vdwg.mxu0
    %399 = vst [vmem:[#allocation4 + $0x8] sm:$0xff] %v396
    %v400 = vld [vmem:[%s7] sm:$0x1]
    %v402 = vlaneseq
    %v403 = vshrl.u32 %v402, 7
    %v404 = vsub.s32 0, %v403
    %v405 = vrot.slane %v400, %v404
    %407 = vst [vmem:[#allocation4 + $0x10] sm:$0xff] %v405
    %v408 = vld [vmem:[#allocation4] sm:$0xff]
    %v409 = vld [vmem:[#allocation4 + $0x8] sm:$0xff]
    %v410 = vld [vmem:[#allocation4 + $0x10] sm:$0xff]
    %v411 = vld [vmem:[#allocation13] sm:$0xff]
    %v412 = vld [vmem:[#allocation13 + $0x8] sm:$0xff]
    %v413 = vld [vmem:[#allocation13 + $0x10] sm:$0xff]
    %v414 = vld [vmem:[#allocation13 + $0x18] sm:$0xff]
    %v415 = vld [vmem:[#allocation13 + $0x20] sm:$0xff]
    %v416 = vld [vmem:[#allocation13 + $0x28] sm:$0xff]
    %v417 = vld [vmem:[#allocation13 + $0x30] sm:$0xff]
    %v418 = vld [vmem:[#allocation13 + $0x38] sm:$0xff]
    %v419 = vld [vmem:[#allocation13 + $0x40] sm:$0xff]
    %v420 = vld [vmem:[#allocation13 + $0x48] sm:$0xff]
    %v421 = vld [vmem:[#allocation13 + $0x50] sm:$0xff]
    %v422 = vld [vmem:[#allocation13 + $0x58] sm:$0xff]
    %v423 = vld [vmem:[#allocation13 + $0x60] sm:$0xff]
    %v424 = vld [vmem:[#allocation13 + $0x68] sm:$0xff]
    %v425 = vld [vmem:[#allocation13 + $0x70] sm:$0xff]
    %v426 = vld [vmem:[#allocation13 + $0x78] sm:$0xff]
    %v427 = vld [vmem:[#allocation13 + $0x80] sm:$0xff]
    %v428 = vld [vmem:[#allocation13 + $0x88] sm:$0xff]
    %v429 = vld [vmem:[#allocation13 + $0x90] sm:$0xff]
    %v430 = vld [vmem:[#allocation13 + $0x98] sm:$0xff]
    %v431 = vld [vmem:[#allocation13 + $0xa0] sm:$0xff]
    %v432 = vld [vmem:[#allocation13 + $0xa8] sm:$0xff]
    %v433 = vld [vmem:[#allocation13 + $0xb0] sm:$0xff]
    %v434 = vld [vmem:[#allocation13 + $0xb8] sm:$0xff]
    %v435 = vld [vmem:[#allocation13 + $0xc0] sm:$0xff]
    %v436 = vld [vmem:[#allocation13 + $0xc8] sm:$0xff]
    %v437 = vld [vmem:[#allocation13 + $0xd0] sm:$0xff]
    %v438 = vld [vmem:[#allocation13 + $0xd8] sm:$0xff]
    %v439 = vld [vmem:[#allocation13 + $0xe0] sm:$0xff]
    %v440 = vld [vmem:[#allocation13 + $0xe8] sm:$0xff]
    %v441 = vld [vmem:[#allocation13 + $0xf0] sm:$0xff]
    %v442 = vld [vmem:[#allocation13 + $0xf8] sm:$0xff]
    %v443 = vld [vmem:[#allocation13 + $0x100] sm:$0xff]
    %v444 = vld [vmem:[#allocation13 + $0x108] sm:$0xff]
    %v445 = vld [vmem:[#allocation13 + $0x110] sm:$0xff]
    %v446 = vld [vmem:[#allocation13 + $0x118] sm:$0xff]
    %v447 = vld [vmem:[#allocation13 + $0x120] sm:$0xff]
    %v448 = vld [vmem:[#allocation13 + $0x128] sm:$0xff]
    %v449 = vld [vmem:[#allocation13 + $0x130] sm:$0xff]
    %v450 = vld [vmem:[#allocation13 + $0x138] sm:$0xff]
    %v451 = vld [vmem:[#allocation13 + $0x140] sm:$0xff]
    %v452 = vld [vmem:[#allocation13 + $0x148] sm:$0xff]
    %v453 = vld [vmem:[#allocation13 + $0x150] sm:$0xff]
    %v454 = vld [vmem:[#allocation13 + $0x158] sm:$0xff]
    %v455 = vld [vmem:[#allocation13 + $0x160] sm:$0xff]
    %v456 = vld [vmem:[#allocation13 + $0x168] sm:$0xff]
    %v457 = vld [vmem:[#allocation13 + $0x170] sm:$0xff]
    %v458 = vld [vmem:[#allocation13 + $0x178] sm:$0xff]
    %v459 = vld [vmem:[%s9] sm:$0x1]
    %v461 = vlaneseq
    %v462 = vshrl.u32 %v461, 7
    %v463 = vsub.s32 0, %v462
    %v464 = vrot.slane %v459, %v463
    %466 = vmatprep.subr.mxu0 0.0
    %467 = vmatpush1.msra.mxu0 %v411
    %468 = vmatprep.subr.mxu0 0.0
    %469 = vmatpush1.msra.mxu0 %v412
    %470 = vmatprep.subr.mxu0 0.0
    %471 = vmatpush1.msra.mxu0 %v413
    %472 = vmatprep.subr.mxu0 0.0
    %473 = vmatpush1.msra.mxu0 %v414
    %474 = vmatprep.subr.mxu0 0.0
    %475 = vmatpush1.msra.mxu0 %v415
    %476 = vmatprep.subr.mxu0 0.0
    %477 = vmatpush1.msra.mxu0 %v416
    %478 = vmatprep.subr.mxu0 0.0
    %479 = vmatpush1.msra.mxu0 %v417
    %480 = vmatprep.subr.mxu0 0.0
    %481 = vmatpush1.msra.mxu0 %v418
    %482 = vmatprep.subr.mxu0 0.0
    %483 = vmatpush1.msra.mxu0 %v419
    %484 = vmatprep.subr.mxu0 0.0
    %485 = vmatpush1.msra.mxu0 %v420
    %486 = vmatprep.subr.mxu0 0.0
    %487 = vmatpush1.msra.mxu0 %v421
    %488 = vmatprep.subr.mxu0 0.0
    %489 = vmatpush1.msra.mxu0 %v422
    %490 = vmatprep.subr.mxu0 0.0
    %491 = vmatpush1.msra.mxu0 %v423
    %492 = vmatprep.subr.mxu0 0.0
    %493 = vmatpush1.msra.mxu0 %v424
    %494 = vmatprep.subr.mxu0 0.0
    %495 = vmatpush1.msra.mxu0 %v425
    %496 = vmatprep.subr.mxu0 0.0
    %497 = vmatpush1.msra.mxu0 %v426
    %498 = vmatprep.subr.mxu0 0.0
    %499 = vmatpush1.msra.mxu0 %v427
    %500 = vmatprep.subr.mxu0 0.0
    %501 = vmatpush1.msra.mxu0 %v428
    %502 = vmatprep.subr.mxu0 0.0
    %503 = vmatpush1.msra.mxu0 %v429
    %504 = vmatprep.subr.mxu0 0.0
    %505 = vmatpush1.msra.mxu0 %v430
    %506 = vmatprep.subr.mxu0 0.0
    %507 = vmatpush1.msra.mxu0 %v431
    %508 = vmatprep.subr.mxu0 0.0
    %509 = vmatpush1.msra.mxu0 %v432
    %510 = vmatprep.subr.mxu0 0.0
    %511 = vmatpush1.msra.mxu0 %v433
    %512 = vmatprep.subr.mxu0 0.0
    %513 = vmatpush1.msra.mxu0 %v434
    %514 = vmatprep.subr.mxu0 0.0
    %515 = vmatpush1.msra.mxu0 %v435
    %516 = vmatprep.subr.mxu0 0.0
    %517 = vmatpush1.msra.mxu0 %v436
    %518 = vmatprep.subr.mxu0 0.0
    %519 = vmatpush1.msra.mxu0 %v437
    %520 = vmatprep.subr.mxu0 0.0
    %521 = vmatpush1.msra.mxu0 %v438
    %522 = vmatprep.subr.mxu0 0.0
    %523 = vmatpush1.msra.mxu0 %v439
    %524 = vmatprep.subr.mxu0 0.0
    %525 = vmatpush1.msra.mxu0 %v440
    %526 = vmatprep.subr.mxu0 0.0
    %527 = vmatpush1.msra.mxu0 %v441
    %528 = vmatprep.subr.mxu0 0.0
    %529 = vmatpush1.msra.mxu0 %v442
    %530 = vmatprep.mubr.f32.mxu0 %v409
    %531 = vmatmul.mubr.f32.gmra.mrb[0].mxu0 %v408
    %v532 = vpop.f32.mrb[0].mxu0
    %v533 = vadd.f32 %v464, %v532
    %v534 = vpop.f32.mrb[0].mxu0
    %535 = vdwg.mxu0
    %536 = vmatprep.subr.mxu0 0.0
    %537 = vmatpush1.msra.mxu0 %v443
    %538 = vmatprep.subr.mxu0 0.0
    %539 = vmatpush1.msra.mxu0 %v444
    %540 = vmatprep.subr.mxu0 0.0
    %541 = vmatpush1.msra.mxu0 %v445
    %542 = vmatprep.subr.mxu0 0.0
    %543 = vmatpush1.msra.mxu0 %v446
    %544 = vmatprep.subr.mxu0 0.0
    %545 = vmatpush1.msra.mxu0 %v447
    %546 = vmatprep.subr.mxu0 0.0
    %547 = vmatpush1.msra.mxu0 %v448
    %548 = vmatprep.subr.mxu0 0.0
    %549 = vmatpush1.msra.mxu0 %v449
    %550 = vmatprep.subr.mxu0 0.0
    %551 = vmatpush1.msra.mxu0 %v450
    %552 = vmatprep.subr.mxu0 0.0
    %553 = vmatpush1.msra.mxu0 %v451
    %554 = vmatprep.subr.mxu0 0.0
    %555 = vmatpush1.msra.mxu0 %v452
    %556 = vmatprep.subr.mxu0 0.0
    %557 = vmatpush1.msra.mxu0 %v453
    %558 = vmatprep.subr.mxu0 0.0
    %559 = vmatpush1.msra.mxu0 %v454
    %560 = vmatprep.subr.mxu0 0.0
    %561 = vmatpush1.msra.mxu0 %v455
    %562 = vmatprep.subr.mxu0 0.0
    %563 = vmatpush1.msra.mxu0 %v456
    %564 = vmatprep.subr.mxu0 0.0
    %565 = vmatpush1.msra.mxu0 %v457
    %566 = vmatprep.subr.mxu0 0.0
    %567 = vmatpush1.msra.mxu0 %v458
    %568 = vmatprep.subr.mxu0 0.0
    %569 = vmatpush1.msra.mxu0 0.0
    %570 = vmatprep.subr.mxu0 0.0
    %571 = vmatpush1.msra.mxu0 0.0
    %572 = vmatprep.subr.mxu0 0.0
    %573 = vmatpush1.msra.mxu0 0.0
    %574 = vmatprep.subr.mxu0 0.0
    %575 = vmatpush1.msra.mxu0 0.0
    %576 = vmatprep.subr.mxu0 0.0
    %577 = vmatpush1.msra.mxu0 0.0
    %578 = vmatprep.subr.mxu0 0.0
    %579 = vmatpush1.msra.mxu0 0.0
    %580 = vmatprep.subr.mxu0 0.0
    %581 = vmatpush1.msra.mxu0 0.0
    %582 = vmatprep.subr.mxu0 0.0
    %583 = vmatpush1.msra.mxu0 0.0
    %584 = vmatprep.subr.mxu0 0.0
    %585 = vmatpush1.msra.mxu0 0.0
    %586 = vmatprep.subr.mxu0 0.0
    %587 = vmatpush1.msra.mxu0 0.0
    %588 = vmatprep.subr.mxu0 0.0
    %589 = vmatpush1.msra.mxu0 0.0
    %590 = vmatprep.subr.mxu0 0.0
    %591 = vmatpush1.msra.mxu0 0.0
    %592 = vmatprep.subr.mxu0 0.0
    %593 = vmatpush1.msra.mxu0 0.0
    %594 = vmatprep.subr.mxu0 0.0
    %595 = vmatpush1.msra.mxu0 0.0
    %596 = vmatprep.subr.mxu0 0.0
    %597 = vmatpush1.msra.mxu0 0.0
    %598 = vmatprep.subr.mxu0 0.0
    %599 = vmatpush1.msra.mxu0 0.0
    %600 = vmatprep.mubr.f32.mxu0 0.0
    %601 = vmatmul.mubr.f32.gmra.mrb[0].mxu0 %v410
    %v602 = vpop.f32.mrb[0].mxu0
    %v603 = vadd.f32 %v533, %v602
    %v604 = vpop.f32.mrb[0].mxu0
    %605 = vdwg.mxu0
    %v606 = vmax.f32 %v603, 0.0
    %v607 = vld [vmem:[#allocation14] sm:$0xff]
    %v608 = vld [vmem:[#allocation14 + $0x8] sm:$0xff]
    %v609 = vld [vmem:[#allocation14 + $0x10] sm:$0xff]
    %v610 = vld [vmem:[#allocation14 + $0x18] sm:$0xff]
    %v611 = vld [vmem:[#allocation14 + $0x20] sm:$0xff]
    %v612 = vld [vmem:[#allocation14 + $0x28] sm:$0xff]
    %v613 = vld [vmem:[#allocation14 + $0x30] sm:$0xff]
    %v614 = vld [vmem:[#allocation14 + $0x38] sm:$0xff]
    %v615 = vld [vmem:[#allocation14 + $0x40] sm:$0xff]
    %v616 = vld [vmem:[#allocation14 + $0x48] sm:$0xff]
    %v617 = vld [vmem:[#allocation14 + $0x50] sm:$0xff]
    %v618 = vld [vmem:[#allocation14 + $0x58] sm:$0xff]
    %v619 = vld [vmem:[#allocation14 + $0x60] sm:$0xff]
    %v620 = vld [vmem:[#allocation14 + $0x68] sm:$0xff]
    %v621 = vld [vmem:[#allocation14 + $0x70] sm:$0xff]
    %v622 = vld [vmem:[#allocation14 + $0x78] sm:$0xff]
    %v623 = vld [vmem:[%s11] sm:$0x1]
    %v625 = vlaneseq
    %v626 = vshrl.u32 %v625, 7
    %v627 = vsub.s32 0, %v626
    %v628 = vrot.slane %v623, %v627
    %630 = vmatprep.subr.mxu0 0.0
    %631 = vmatpush1.msra.mxu0 %v607
    %632 = vmatprep.subr.mxu0 0.0
    %633 = vmatpush1.msra.mxu0 %v608
    %634 = vmatprep.subr.mxu0 0.0
    %635 = vmatpush1.msra.mxu0 %v609
    %636 = vmatprep.subr.mxu0 0.0
    %637 = vmatpush1.msra.mxu0 %v610
    %638 = vmatprep.subr.mxu0 0.0
    %639 = vmatpush1.msra.mxu0 %v611
    %640 = vmatprep.subr.mxu0 0.0
    %641 = vmatpush1.msra.mxu0 %v612
    %642 = vmatprep.subr.mxu0 0.0
    %643 = vmatpush1.msra.mxu0 %v613
    %644 = vmatprep.subr.mxu0 0.0
    %645 = vmatpush1.msra.mxu0 %v614
    %646 = vmatprep.subr.mxu0 0.0
    %647 = vmatpush1.msra.mxu0 %v615
    %648 = vmatprep.subr.mxu0 0.0
    %649 = vmatpush1.msra.mxu0 %v616
    %650 = vmatprep.subr.mxu0 0.0
    %651 = vmatpush1.msra.mxu0 %v617
    %652 = vmatprep.subr.mxu0 0.0
    %653 = vmatpush1.msra.mxu0 %v618
    %654 = vmatprep.subr.mxu0 0.0
    %655 = vmatpush1.msra.mxu0 %v619
    %656 = vmatprep.subr.mxu0 0.0
    %657 = vmatpush1.msra.mxu0 %v620
    %658 = vmatprep.subr.mxu0 0.0
    %659 = vmatpush1.msra.mxu0 %v621
    %660 = vmatprep.subr.mxu0 0.0
    %661 = vmatpush1.msra.mxu0 %v622
    %662 = vmatprep.subr.mxu0 0.0
    %663 = vmatpush1.msra.mxu0 0.0
    %664 = vmatprep.subr.mxu0 0.0
    %665 = vmatpush1.msra.mxu0 0.0
    %666 = vmatprep.subr.mxu0 0.0
    %667 = vmatpush1.msra.mxu0 0.0
    %668 = vmatprep.subr.mxu0 0.0
    %669 = vmatpush1.msra.mxu0 0.0
    %670 = vmatprep.subr.mxu0 0.0
    %671 = vmatpush1.msra.mxu0 0.0
    %672 = vmatprep.subr.mxu0 0.0
    %673 = vmatpush1.msra.mxu0 0.0
    %674 = vmatprep.subr.mxu0 0.0
    %675 = vmatpush1.msra.mxu0 0.0
    %676 = vmatprep.subr.mxu0 0.0
    %677 = vmatpush1.msra.mxu0 0.0
    %678 = vmatprep.subr.mxu0 0.0
    %679 = vmatpush1.msra.mxu0 0.0
    %680 = vmatprep.subr.mxu0 0.0
    %681 = vmatpush1.msra.mxu0 0.0
    %682 = vmatprep.subr.mxu0 0.0
    %683 = vmatpush1.msra.mxu0 0.0
    %684 = vmatprep.subr.mxu0 0.0
    %685 = vmatpush1.msra.mxu0 0.0
    %686 = vmatprep.subr.mxu0 0.0
    %687 = vmatpush1.msra.mxu0 0.0
    %688 = vmatprep.subr.mxu0 0.0
    %689 = vmatpush1.msra.mxu0 0.0
    %690 = vmatprep.subr.mxu0 0.0
    %691 = vmatpush1.msra.mxu0 0.0
    %692 = vmatprep.subr.mxu0 0.0
    %693 = vmatpush1.msra.mxu0 0.0
    %694 = vmatprep.mubr.f32.mxu0 0.0
    %695 = vmatmul.mubr.f32.gmra.mrb[0].mxu0 %v606
    %v696 = vpop.f32.mrb[0].mxu0
    %v697 = vadd.f32 %v628, %v696
    %v698 = vpop.f32.mrb[0].mxu0
    %699 = vdwg.mxu0
    %700 = vst [vmem:[#allocation16] sm:$0xff] %v697
    // Predicated region
    $region58: #{tpu_custom_call.1} parent=1 // pred_check
      _
    $region59: #{tpu_custom_call.1} parent=1 // pred_check_branch
      %702 = sbr.rel (0) target = $region61
    $region60: #{tpu_custom_call.1} parent=1 // pred_region
      %s704 = ssub.s32 128, 128
      %705 = vsyncadd [#allocation10], %s704
      %s707 = sshll.u32 [#allocation16], 4
      %s708 = int_to_ptr.vmem [resolvable:$true] %s707
      %710 = dma.vmem_to_hbm [thread:$0]  %s708, 128, %s12, [#allocation10]
    $region61: #{tpu_custom_call.1} parent=1 // pred_fallthru
      _
    // Predicated region
    $region62: #{tpu_custom_call.1} parent=1 // pred_check
      _
    $region63: #{tpu_custom_call.1} parent=1 // pred_check_branch
      %712 = sbr.rel (0) target = $region65
    $region64: #{tpu_custom_call.1} parent=1 // pred_region
      %713 = dma.done [#allocation10], 128
    $region65: #{tpu_custom_call.1} parent=1 // pred_fallthru
      _
    %714 = vsyncpa [#allocation9], 1
    %715 = vsyncpa [#allocation12], 1
    %716 = vsyncpa [#allocation15], 1
    %717 = vsyncpa [#allocation10], 1

</llo_original>
